<compile_context>
chip_gen: v7x
topology: tpu7x:2x2x1
jax: 0.10.0
libtpu: 0.0.40
codegen_flags: <defaults>
</compile_context>

<pallas_src>
import jax
import jax.numpy as jnp
from jax import lax
from jax.experimental import pallas as pl
from jax.experimental.pallas import tpu as pltpu


# ----------------------------------------------------------------------------
# Kernel 1: q-sample noising (scheduler math inside `_unet_pred_noise`)
# ----------------------------------------------------------------------------
def _q_sample_kernel(scale_a_ref, scale_b_ref, x_ref, noise_ref, out_ref):
    # Block covers all nt timesteps for one lane tile of C*H*W.
    a = scale_a_ref[...]                          # (nt, 1)   f32, VMEM
    b = scale_b_ref[...]                          # (nt, 1)   f32, VMEM
    x = x_ref[...].astype(jnp.float32)            # (1,  tile) -> row-broadcast
    n = noise_ref[...].astype(jnp.float32)        # (nt, tile)
    out_ref[...] = (x * a + n * b).astype(out_ref.dtype)


def _pick_lane_tile(chw, max_tile=8192):
    """Largest multiple-of-128 tile (<= max_tile) that evenly divides chw."""
    if chw % 128 != 0:
        return chw                                 # full-dim block is always legal
    tile = min(chw, max_tile)
    tile -= tile % 128
    while chw % tile != 0:
        tile -= 128
    return tile


def q_sample_pallas(x_start, t, noise, alphas_cumprod, lane_tile=None):
    """x_start: [1, C, H, W]; t: [nt] int32; noise: [nt, C, H, W].

    Returns noised_latent: [nt, C, H, W] — same math as the non-DiT branch of
    `_unet_pred_noise`.  No wrapper-side dtype upcast: the native dtype goes
    straight into the kernel and is cast to f32 after the load.
    """
    nt = t.shape[0]
    _, C, H, W = x_start.shape
    chw = C * H * W
    out_dtype = jnp.promote_types(x_start.dtype, noise.dtype)

    ac_t = alphas_cumprod[t].astype(jnp.float32)           # tiny gather = glue
    scale_a = jnp.sqrt(ac_t).reshape(nt, 1)                # (nt, 1) f32 VMEM
    scale_b = jnp.sqrt(1.0 - ac_t).reshape(nt, 1)

    x_flat = x_start.reshape(1, chw)                       # native dtype
    n_flat = noise.reshape(nt, chw)                        # native dtype

    tile = lane_tile if lane_tile is not None else _pick_lane_tile(chw)
    assert chw % tile == 0
    grid = (chw // tile,)                                  # >= 2 steps feeds both
                                                           # v7x TensorCores

    out = pl.pallas_call(
        _q_sample_kernel,
        out_shape=jax.ShapeDtypeStruct((nt, chw), out_dtype),
        grid=grid,
        in_specs=[
            pl.BlockSpec((nt, 1), lambda j: (0, 0)),       # scale_a (resident)
            pl.BlockSpec((nt, 1), lambda j: (0, 0)),       # scale_b (resident)
            pl.BlockSpec((1, tile), lambda j: (0, j)),     # x_start lane tile
            pl.BlockSpec((nt, tile), lambda j: (0, j)),    # noise lane tile
        ],
        out_specs=pl.BlockSpec((nt, tile), lambda j: (0, j)),
        compiler_params=pltpu.CompilerParams(
            dimension_semantics=("parallel",)),
    )(scale_a, scale_b, x_flat, n_flat)

    return out.reshape(nt, C, H, W)


# ----------------------------------------------------------------------------
# Kernel 2: softmax over (selected) class logits, used in `classify`
# ----------------------------------------------------------------------------
def _softmax_kernel(logits_ref, probs_ref):
    x = logits_ref[...].astype(jnp.float32)
    m = jnp.max(x, axis=-1, keepdims=True)
    e = jnp.exp(x - m)                       # padded lanes hold -1e30 -> exp ~ 0
    s = jnp.sum(e, axis=-1, keepdims=True)
    probs_ref[...] = e * pl.reciprocal(s, approx=True)   # EUP slot, not VPU div


def softmax_pallas(logits):
    """logits: [B, N] -> softmax along last axis (lane-padded to 128)."""
    B, N = logits.shape
    n_pad = -N % 128
    if n_pad:
        pad = jnp.full((B, n_pad), -1e30, dtype=logits.dtype)   # masked lanes
        logits_p = jnp.concatenate([logits, pad], axis=-1)
    else:
        logits_p = logits
    Np = N + n_pad
    probs_p = pl.pallas_call(
        _softmax_kernel,
        out_shape=jax.ShapeDtypeStruct((B, Np), jnp.float32),
        in_specs=[pl.BlockSpec((B, Np), lambda: (0, 0))],
        out_specs=pl.BlockSpec((B, Np), lambda: (0, 0)),
    )(logits_p)
    return probs_p[:, :N]


# ----------------------------------------------------------------------------
# classify() semantics (post-classifier part of TTABase_Class.classify)
# ----------------------------------------------------------------------------
def classify_from_logits(full_logits, classes, adapt_topk=-1):
    """full_logits: [B, num_total_classes] (output of the external classifier).

    Mirrors:  logits = logits[:, classes]; probs = softmax(logits);
              max/topk index bookkeeping (lax.top_k instead of full argsort).
    """
    # TODO(synk): the external `class_model` (CNN/ViT backbone) is not part of
    # this base class and is not re-implemented here.
    logits = full_logits[:, classes] if classes is not None else full_logits
    probs = softmax_pallas(logits)                      # Pallas hot path
    max_idx = jnp.argmax(probs, axis=-1)
    K = probs.shape[-1] if adapt_topk == -1 else adapt_topk
    _, topk_idx = lax.top_k(probs, K)                   # O(N*K), not full sort
    if classes is not None:
        max_class_idx = classes[max_idx.reshape(-1)].reshape(max_idx.shape)
        topk_class_idx = classes[topk_idx.reshape(-1)].reshape(topk_idx.shape)
    else:
        max_class_idx, topk_class_idx = max_idx, topk_idx
    return logits, topk_idx, max_class_idx, topk_class_idx


# ----------------------------------------------------------------------------
# main
# ----------------------------------------------------------------------------
if __name__ == "__main__":
    key = jax.random.PRNGKey(0)
    k1, k2, k3, k4 = jax.random.split(key, 4)

    # Small, module-consistent shapes
    C, H, W = 4, 16, 16          # latent [1, C, H, W]
    nt = 8                       # num sampled timesteps
    num_total_classes = 16
    embed_dim = 32
    num_timesteps_total = 50

    # Deterministic "parameters" implied by __init__
    class_text_embeddings = jax.random.normal(
        k1, (num_total_classes, embed_dim), dtype=jnp.float32)
    classes = jnp.array([0, 2, 3, 5, 7, 9, 11, 13], dtype=jnp.int32)
    selected_text_embeddings = class_text_embeddings[classes]   # nn.Parameter analog

    # Deterministic scheduler alphas_cumprod
    alphas_cumprod = jnp.linspace(0.999, 0.01, num_timesteps_total,
                                  dtype=jnp.float32)

    # Inputs
    x_start = jax.random.normal(k2, (1, C, H, W), dtype=jnp.float32)
    noise = jax.random.normal(k3, (nt, C, H, W), dtype=jnp.float32)
    t = jnp.array([1, 5, 10, 15, 20, 25, 30, 40], dtype=jnp.int32)
    image_logits = jax.random.normal(k4, (1, num_total_classes),
                                     dtype=jnp.float32)

    # --- q-sample noising hot path (Pallas) ---
    # lane_tile=512 -> grid=(2,) parallel steps (keeps both v7x TCs busy).
    noised = q_sample_pallas(x_start, t, noise, alphas_cumprod, lane_tile=512)
    noised = jax.block_until_ready(noised)
    ac_t = alphas_cumprod[t]
    ref_noised = (x_start * jnp.sqrt(ac_t)[:, None, None, None]
                  + noise * jnp.sqrt(1.0 - ac_t)[:, None, None, None])
    assert jnp.allclose(noised, ref_noised, atol=1e-5, rtol=1e-5)
    # TODO(synk): the external `unet_model(noised_latent, t, ...)` call that
    # produces pred_noise is a full U-Net and is not re-implemented here.

    # --- classify hot path (Pallas softmax) ---
    logits, topk_idx, max_class_idx, topk_class_idx = classify_from_logits(
        image_logits, classes, adapt_topk=-1)
    logits = jax.block_until_ready(logits)
    ref_probs = jax.nn.softmax(image_logits[:, classes], axis=-1)
    got_probs = softmax_pallas(image_logits[:, classes])
    # approx reciprocal (EUP) -> slightly looser tolerance than exact divide
    assert jnp.allclose(got_probs, ref_probs, atol=1e-3, rtol=1e-3)
    assert jnp.argmax(ref_probs, -1)[0] == jnp.argmax(got_probs, -1)[0]
    ref_topk = jnp.argsort(-ref_probs, axis=-1)[:, :ref_probs.shape[-1]]
    assert jnp.array_equal(topk_idx, ref_topk)

    _ = jax.block_until_ready((topk_idx, max_class_idx, topk_class_idx,
                               selected_text_embeddings))
    print("KERNEL_OK")
</pallas_src>

<mosaic_0001>
module attributes {stable_mosaic.version = 11 : i64} {
  func.func @_q_sample_kernel(%arg0: i32, %arg1: memref<8x1xf32, #tpu.memory_space<vmem>>, %arg2: memref<8x1xf32, #tpu.memory_space<vmem>>, %arg3: memref<1x512xf32, #tpu.memory_space<vmem>>, %arg4: memref<8x512xf32, #tpu.memory_space<vmem>>, %arg5: memref<8x512xf32, #tpu.memory_space<vmem>>) attributes {dimension_semantics = [#tpu.dimension_semantics<parallel>], iteration_bounds = array<i64: 2>, scalar_prefetch = 0 : i64, scratch_operands = 0 : i64, tpu.core_type = #tpu.core_type<tc>, window_params = [{pipeline_mode = #tpu.pipeline_mode<synchronous>, transform_indices = @transform_0, window_bounds = array<i64: 8, 1>}, {pipeline_mode = #tpu.pipeline_mode<synchronous>, transform_indices = @transform_1, window_bounds = array<i64: 8, 1>}, {transform_indices = @transform_2, window_bounds = array<i64: 1, 512>}, {transform_indices = @transform_3, window_bounds = array<i64: 8, 512>}, {transform_indices = @transform_4, window_bounds = array<i64: 8, 512>}]} {
    %c0 = arith.constant 0 : index
    %c0_0 = arith.constant 0 : index
    %0 = vector.load %arg1[%c0, %c0_0] : memref<8x1xf32, #tpu.memory_space<vmem>>, vector<8x1xf32>
    %c0_1 = arith.constant 0 : index
    %c0_2 = arith.constant 0 : index
    %1 = vector.load %arg2[%c0_1, %c0_2] : memref<8x1xf32, #tpu.memory_space<vmem>>, vector<8x1xf32>
    %c0_3 = arith.constant 0 : index
    %c0_4 = arith.constant 0 : index
    %2 = vector.load %arg3[%c0_3, %c0_4] : memref<1x512xf32, #tpu.memory_space<vmem>>, vector<1x512xf32>
    %c0_5 = arith.constant 0 : index
    %c0_6 = arith.constant 0 : index
    %3 = vector.load %arg4[%c0_5, %c0_6] : memref<8x512xf32, #tpu.memory_space<vmem>>, vector<8x512xf32>
    %4 = vector.broadcast %2 : vector<1x512xf32> to vector<8x512xf32>
    %5 = vector.broadcast %0 : vector<8x1xf32> to vector<8x512xf32>
    %6 = arith.mulf %4, %5 : vector<8x512xf32>
    %7 = vector.broadcast %1 : vector<8x1xf32> to vector<8x512xf32>
    %8 = arith.mulf %3, %7 : vector<8x512xf32>
    %9 = arith.addf %6, %8 : vector<8x512xf32>
    %c0_7 = arith.constant 0 : index
    %c0_8 = arith.constant 0 : index
    %10 = vector.load %arg5[%c0_7, %c0_8] : memref<8x512xf32, #tpu.memory_space<vmem>>, vector<8x512xf32>
    tpu.vector_store %arg5[%c0_7, %c0_8], %9 {strides = array<i32>} : memref<8x512xf32, #tpu.memory_space<vmem>>, vector<8x512xf32>,
    return
  }
  func.func @transform_0(%arg0: i32) -> (i32, i32) {
    %c0_i32 = arith.constant 0 : i32
    %c0_i32_0 = arith.constant 0 : i32
    %c0_i32_1 = arith.constant 0 : i32
    return %c0_i32, %c0_i32_0 : i32, i32
  }
  func.func @transform_1(%arg0: i32) -> (i32, i32) {
    %c0_i32 = arith.constant 0 : i32
    %c0_i32_0 = arith.constant 0 : i32
    %c0_i32_1 = arith.constant 0 : i32
    return %c0_i32, %c0_i32_0 : i32, i32
  }
  func.func @transform_2(%arg0: i32) -> (i32, i32) {
    %c0_i32 = arith.constant 0 : i32
    %c0_i32_0 = arith.constant 0 : i32
    return %c0_i32, %arg0 : i32, i32
  }
  func.func @transform_3(%arg0: i32) -> (i32, i32) {
    %c0_i32 = arith.constant 0 : i32
    %c0_i32_0 = arith.constant 0 : i32
    return %c0_i32, %arg0 : i32, i32
  }
  func.func @transform_4(%arg0: i32) -> (i32, i32) {
    %c0_i32 = arith.constant 0 : i32
    %c0_i32_0 = arith.constant 0 : i32
    return %c0_i32, %arg0 : i32, i32
  }
}

</mosaic_0001>

<llo_original>
// kernel: tpu_custom_call.1
$region0: #{tpu_custom_call.1}
  #allocation0 [shape = 'u32[]', space=smem, size = 0x4, offset = 0x4, fixed_abs, tag = 'smem constant byte address 0x4 - core index']
  #allocation1 [shape = 'u32[144,128]{1,0:T(1,128)}', space=vmem, size = 0x12000, scoped, tag = 'internal scratch']
  %s0 = inlined_call_operand.vmem [shape: f32[8,1], index: 0, kind: input, shape index: {}]
  %s1 = inlined_call_operand.vmem [shape: f32[8,1], index: 1, kind: input, shape index: {}]
  %s2 = inlined_call_operand.vmem [shape: f32[1,1024], index: 2, kind: input, shape index: {}]
  %s3 = inlined_call_operand.hbm [shape: f32[8,1024], index: 3, kind: input, shape index: {}]
  %s4 = inlined_call_operand.hbm [shape: f32[8,1024], index: 4, kind: output, shape index: {}]
  %s5 = sld [smem:[#allocation0]]
  $region53: #{tpu_custom_call.1} parent=0
    _
  %s7 = ssub.s32 1, %s5
  %s8 = scalar_select 0, %s7, %s5
  $region1: #{tpu_custom_call.1} parent=0
    #allocation2 [shape = 'u8[32768]{0}', space=vmem, size = 0x8000, scoped, tag = 'input window, operand 3']
    #allocation3 [shape = 's32[2]{0}', space=sflag, size = 0x8, scoped, tag = 'scoped memory for tpu_custom_call.1']
    #allocation4 [shape = 's32[2]{0}', space=sflag, size = 0x8, scoped, tag = 'scoped memory for tpu_custom_call.1']
    #allocation5 [shape = 'u8[32768]{0}', space=vmem, size = 0x8000, scoped, tag = 'output window, operand 0']
    %9 = vsyncpa [#allocation3], 0
    %s10 = scalar_lea.sflag [#allocation3], 1
    %11 = vsyncpa %s10, 0
    %12 = vsyncpa [#allocation4], 0
    %s13 = scalar_lea.sflag [#allocation4], 1
    %14 = vsyncpa %s13, 0
    loop: start=0, step=1, limit=4
    $region2: #{tpu_custom_call.1} parent=1 // loop_pre_header
      _
    $region3: #{tpu_custom_call.1} parent=1 // loop_header
      %s16 = sphi 0, %s20
      %p17 = scmp.ge.s32.totalorder %s16, 4
      %s24 = sphi 0, %s24
      %s26 = sphi 0, %s24
      %s27 = sphi 0, %s26
      %s41 = sphi 0, %s27
      %s45 = sphi 0, %s45
      %s47 = sphi 0, %s45
      %s48 = sphi 0, %s47
      %s62 = sphi 0, %s48
      %s68 = sphi 0, %s70
      %s71 = sphi 0, %s68
      %s72 = sphi 0, %s71
      %s88 = sphi 0, %s72
      %s94 = sphi 0, %s96
      %s97 = sphi 0, %s94
      %s98 = sphi 0, %s97
      %s114 = sphi 0, %s98
      %s120 = sphi 0, %s122
      %s123 = sphi 0, %s120
      %s124 = sphi 0, %s123
      %s140 = sphi 0, %s124
    $region4: #{tpu_custom_call.1} parent=1 // loop_header_branch
      %19 = sbr.rel (%p17) target = $region8
    $region5: #{tpu_custom_call.1} parent=1 // loop_body
      %s21 = ssub.s32 %s16, 1
      %s22 = ssub.s32 %s16, 2
      %s23 = sadd.s32 %s16, 1
      %s25 = sadd.s32 %s24, 1
      %p28 = scmp.eq.s32.totalorder %s16, 1
      %p29 = scmp.ne.s32.totalorder %s24, %s26
      %p30 = scmp.eq.s32.totalorder %s16, 0
      %p31 = por %p29, %p30
      %p32 = scmp.ne.s32.totalorder %s24, %s26
      %p33 = scmp.eq.s32.totalorder %s21, 1
      %p34 = por %p32, %p33
      %p35 = scmp.ne.s32.totalorder %s26, %s27
      %p36 = scmp.eq.s32.totalorder %s21, 0
      %p37 = por %p35, %p36
      %p38 = scmp.ne.s32.totalorder %s26, %s27
      %p39 = scmp.eq.s32.totalorder %s22, 1
      %p40 = por %p38, %p39
      %p42 = scmp.ne.s32.totalorder %s27, %s41
      %p43 = scmp.eq.s32.totalorder %s22, 0
      %p44 = por %p42, %p43
      %s46 = sadd.s32 %s45, 1
      %p49 = scmp.eq.s32.totalorder %s16, 1
      %p50 = scmp.ne.s32.totalorder %s45, %s47
      %p51 = scmp.eq.s32.totalorder %s16, 0
      %p52 = por %p50, %p51
      %p53 = scmp.ne.s32.totalorder %s45, %s47
      %p54 = scmp.eq.s32.totalorder %s21, 1
      %p55 = por %p53, %p54
      %p56 = scmp.ne.s32.totalorder %s47, %s48
      %p57 = scmp.eq.s32.totalorder %s21, 0
      %p58 = por %p56, %p57
      %p59 = scmp.ne.s32.totalorder %s47, %s48
      %p60 = scmp.eq.s32.totalorder %s22, 1
      %p61 = por %p59, %p60
      %p63 = scmp.ne.s32.totalorder %s48, %s62
      %p64 = scmp.eq.s32.totalorder %s22, 0
      %p65 = por %p63, %p64
      %s66 = ssub.s32 %s16, %s23
      %p67 = scmp.eq.s32.totalorder %s66, 0
      %s69 = sadd.s32 %s68, 1
      %s70 = scalar_select %p67, %s68, %s69
      %p73 = pneg %p67
      %p74 = scmp.eq.s32.totalorder %s16, 1
      %p75 = por %p73, %p74
      %p76 = scmp.ne.s32.totalorder %s68, %s71
      %p77 = scmp.eq.s32.totalorder %s16, 0
      %p78 = por %p76, %p77
      %p79 = scmp.ne.s32.totalorder %s68, %s71
      %p80 = scmp.eq.s32.totalorder %s21, 1
      %p81 = por %p79, %p80
      %p82 = scmp.ne.s32.totalorder %s71, %s72
      %p83 = scmp.eq.s32.totalorder %s21, 0
      %p84 = por %p82, %p83
      %p85 = scmp.ne.s32.totalorder %s71, %s72
      %p86 = scmp.eq.s32.totalorder %s22, 1
      %p87 = por %p85, %p86
      %p89 = scmp.ne.s32.totalorder %s72, %s88
      %p90 = scmp.eq.s32.totalorder %s22, 0
      %p91 = por %p89, %p90
      %s92 = ssub.s32 %s16, %s23
      %p93 = scmp.eq.s32.totalorder %s92, 0
      %s95 = sadd.s32 %s94, 1
      %s96 = scalar_select %p93, %s94, %s95
      %p99 = pneg %p93
      %p100 = scmp.eq.s32.totalorder %s16, 1
      %p101 = por %p99, %p100
      %p102 = scmp.ne.s32.totalorder %s94, %s97
      %p103 = scmp.eq.s32.totalorder %s16, 0
      %p104 = por %p102, %p103
      %p105 = scmp.ne.s32.totalorder %s94, %s97
      %p106 = scmp.eq.s32.totalorder %s21, 1
      %p107 = por %p105, %p106
      %p108 = scmp.ne.s32.totalorder %s97, %s98
      %p109 = scmp.eq.s32.totalorder %s21, 0
      %p110 = por %p108, %p109
      %p111 = scmp.ne.s32.totalorder %s97, %s98
      %p112 = scmp.eq.s32.totalorder %s22, 1
      %p113 = por %p111, %p112
      %p115 = scmp.ne.s32.totalorder %s98, %s114
      %p116 = scmp.eq.s32.totalorder %s22, 0
      %p117 = por %p115, %p116
      %s118 = ssub.s32 %s16, %s23
      %p119 = scmp.eq.s32.totalorder %s118, 0
      %s121 = sadd.s32 %s120, 1
      %s122 = scalar_select %p119, %s120, %s121
      %p125 = pneg %p119
      %p126 = scmp.eq.s32.totalorder %s16, 1
      %p127 = por %p125, %p126
      %p128 = scmp.ne.s32.totalorder %s120, %s123
      %p129 = scmp.eq.s32.totalorder %s16, 0
      %p130 = por %p128, %p129
      %p131 = scmp.ne.s32.totalorder %s120, %s123
      %p132 = scmp.eq.s32.totalorder %s21, 1
      %p133 = por %p131, %p132
      %p134 = scmp.ne.s32.totalorder %s123, %s124
      %p135 = scmp.eq.s32.totalorder %s21, 0
      %p136 = por %p134, %p135
      %p137 = scmp.ne.s32.totalorder %s123, %s124
      %p138 = scmp.eq.s32.totalorder %s22, 1
      %p139 = por %p137, %p138
      %p141 = scmp.ne.s32.totalorder %s124, %s140
      %p142 = scmp.eq.s32.totalorder %s22, 0
      %p143 = por %p141, %p142
      %p144 = scmp.le.s32.totalorder 1, %s16
      %p145 = scmp.lt.s32.totalorder %s16, 3
      %p146 = pnand %p144, %p145
      %p147 = pneg %p146
      // Predicated region
      $region9: #{tpu_custom_call.1} parent=5 // pred_check
        _
      $region10: #{tpu_custom_call.1} parent=5 // pred_check_branch
        %149 = sbr.rel (%p146) target = $region12
      $region11: #{tpu_custom_call.1} parent=5 // pred_region
        %s150 = ssub.s32 %s16, 1
        // Predicated region
        $region13: #{tpu_custom_call.1} parent=11 // pred_check
          %p151 = pneg %p37
        $region14: #{tpu_custom_call.1} parent=11 // pred_check_branch
          %153 = sbr.rel (%p151) target = $region16
        $region15: #{tpu_custom_call.1} parent=11 // pred_region
          _
        $region16: #{tpu_custom_call.1} parent=11 // pred_fallthru
          _
        // Predicated region
        $region17: #{tpu_custom_call.1} parent=11 // pred_check
          %p154 = pneg %p58
        $region18: #{tpu_custom_call.1} parent=11 // pred_check_branch
          %156 = sbr.rel (%p154) target = $region20
        $region19: #{tpu_custom_call.1} parent=11 // pred_region
          _
        $region20: #{tpu_custom_call.1} parent=11 // pred_fallthru
          _
      $region12: #{tpu_custom_call.1} parent=5 // pred_fallthru
        _
      %p157 = scmp.lt.s32.totalorder %s16, 2
      // Predicated region
      $region21: #{tpu_custom_call.1} parent=5 // pred_check
        %p158 = pneg %p157
      $region22: #{tpu_custom_call.1} parent=5 // pred_check_branch
        %160 = sbr.rel (%p158) target = $region24
      $region23: #{tpu_custom_call.1} parent=5 // pred_region
        // Predicated region
        $region25: #{tpu_custom_call.1} parent=23 // pred_check
          %p161 = pneg %p78
        $region26: #{tpu_custom_call.1} parent=23 // pred_check_branch
          %163 = sbr.rel (%p161) target = $region28
        $region27: #{tpu_custom_call.1} parent=23 // pred_region
          %s164 = smul.u32 4, %s16
          %p165 = scmp.lt.s32.totalorder %s164, 7
          %s166 = scalar_select %p165, %s164, 7
          %s167 = scalar_lea.vmem %s2, %s166
          %s168 = smul.u32 4, %s16
        $region28: #{tpu_custom_call.1} parent=23 // pred_fallthru
          _
        // Predicated region
        $region29: #{tpu_custom_call.1} parent=23 // pred_check
          %p169 = pneg %p104
        $region30: #{tpu_custom_call.1} parent=23 // pred_check_branch
          %171 = sbr.rel (%p169) target = $region32
        $region31: #{tpu_custom_call.1} parent=23 // pred_region
          %s172 = sand.u32 %s94, 1
          %s173 = scalar_lea.sflag [#allocation3], %s172
          %s174 = sand.u32 %s94, 1
          %s175 = smul.addr %s174, 32
          %s176 = scalar_lea.vmem [#allocation2], %s175
          %s177 = smul.u32 4, %s16
          %s179 = ssub.s32 512, 512
          %180 = vsyncadd %s173, %s179
          %s181 = smul.addr %s177, 128
          %s182 = scalar_lea.hbm %s3, %s181
          %s184 = sshll.u32 %s176, 4
          %s185 = int_to_ptr.vmem [resolvable:$true] %s184
          %187 = dma.hbm_to_vmem [thread:$0]  %s182, 512, %s185, %s173
        $region32: #{tpu_custom_call.1} parent=23 // pred_fallthru
          _
      $region24: #{tpu_custom_call.1} parent=5 // pred_fallthru
        _
      %p188 = scmp.le.s32.totalorder 1, %s16
      %p189 = scmp.lt.s32.totalorder %s16, 3
      %p190 = pnand %p188, %p189
      %p191 = pneg %p190
      // Predicated region
      $region33: #{tpu_custom_call.1} parent=5 // pred_check
        _
      $region34: #{tpu_custom_call.1} parent=5 // pred_check_branch
        %193 = sbr.rel (%p190) target = $region36
      $region35: #{tpu_custom_call.1} parent=5 // pred_region
        %s194 = ssub.s32 %s16, 1
        %s195 = sand.u32 %s97, 1
        %s196 = scalar_lea.sflag [#allocation3], %s195
        %s197 = sand.u32 %s97, 1
        %s198 = smul.addr %s197, 32
        %s199 = scalar_lea.vmem [#allocation2], %s198
        // Predicated region
        $region37: #{tpu_custom_call.1} parent=35 // pred_check
          %p200 = pneg %p110
        $region38: #{tpu_custom_call.1} parent=35 // pred_check_branch
          %202 = sbr.rel (%p200) target = $region40
        $region39: #{tpu_custom_call.1} parent=35 // pred_region
          %203 = dma.done %s196, 512
        $region40: #{tpu_custom_call.1} parent=35 // pred_fallthru
          _
        %p204 = pneg %p37
        %p205 = pneg %p34
        %p206 = pneg %p58
        %p207 = pneg %p55
        %s208 = smul.u32 4, %s21
        %p209 = scmp.lt.s32.totalorder %s208, 7
        %s210 = scalar_select %p209, %s208, 7
        %s211 = scalar_lea.vmem %s2, %s210
        %p212 = pneg %p84
        %p213 = pneg %p81
        %s214 = sand.u32 %s97, 1
        %s215 = scalar_lea.sflag [#allocation3], %s214
        %s216 = sand.u32 %s97, 1
        %s217 = smul.addr %s216, 32
        %s218 = scalar_lea.vmem [#allocation2], %s217
        %p219 = pneg %p110
        %p220 = pneg %p107
        %p221 = pneg %p136
        %p222 = pneg %p133
        %s223 = sand.u32 %s123, 1
        %s224 = scalar_lea.sflag [#allocation4], %s223
        %s225 = sand.u32 %s123, 1
        %s226 = smul.addr %s225, 32
        %s227 = scalar_lea.vmem [#allocation5], %s226
        %s228 = smul.u32 4, %s21
        %p229 = scmp.lt.s32.totalorder %s228, 7
        %s230 = scalar_select %p229, %s228, 7
        %s231 = scalar_lea.vmem %s2, %s230
        %s232 = smul.u32 4, %s21
        %s233 = smul.u32 4, %s21
        %s234 = smul.u32 4, %s21
        %v235 = vld [vmem:[%s0] sm:$0xff]
        %v236 = vld [vmem:[%s1] sm:$0xff]
        %v237 = vld [vmem:[%s231] sm:$0xf]
        %v238 = vld [vmem:[%s199] sm:$0xff]
        %v239 = vld [vmem:[%s199 + $0x8] sm:$0xff]
        %v240 = vld [vmem:[%s199 + $0x10] sm:$0xff]
        %v241 = vld [vmem:[%s199 + $0x18] sm:$0xff]
        %v243 = vlaneseq
        %v244 = vshrl.u32 %v243, 7
        %v245 = vsub.s32 0, %v244
        %v246 = vrot.slane %v237, %v245
        %v247 = vlaneseq
        %v248 = vshrl.u32 %v247, 7
        %v249 = vsub.s32 1, %v248
        %v250 = vrot.slane %v237, %v249
        %v251 = vlaneseq
        %v252 = vshrl.u32 %v251, 7
        %v253 = vsub.s32 2, %v252
        %v254 = vrot.slane %v237, %v253
        %v255 = vlaneseq
        %v256 = vshrl.u32 %v255, 7
        %v257 = vsub.s32 3, %v256
        %v258 = vrot.slane %v237, %v257
        %264 = vset.pattern.permute.xlu0 0
        %265 = vperm.xlu0 %264, %v235
        %v266 = vpop.permute.xlu0 %265
        %v268 = vmul.f32 %v246, %v266
        %v269 = vmul.f32 %v250, %v266
        %v270 = vmul.f32 %v254, %v266
        %v271 = vmul.f32 %v258, %v266
        %273 = vset.pattern.permute.xlu0 0
        %274 = vperm.xlu0 %273, %v236
        %v275 = vpop.permute.xlu0 %274
        %v277 = vmul.f32 %v238, %v275
        %v278 = vmul.f32 %v239, %v275
        %v279 = vmul.f32 %v240, %v275
        %v280 = vmul.f32 %v241, %v275
        %v281 = vadd.f32 %v268, %v277
        %v282 = vadd.f32 %v269, %v278
        %v283 = vadd.f32 %v270, %v279
        %v284 = vadd.f32 %v271, %v280
        %285 = vst [vmem:[%s227] sm:$0xff] %v281
        %286 = vst [vmem:[%s227 + $0x8] sm:$0xff] %v282
        %287 = vst [vmem:[%s227 + $0x10] sm:$0xff] %v283
        %288 = vst [vmem:[%s227 + $0x18] sm:$0xff] %v284
        %s289 = sand.u32 %s123, 1
        %s290 = scalar_lea.sflag [#allocation4], %s289
        %s291 = sand.u32 %s123, 1
        %s292 = smul.addr %s291, 32
        %s293 = scalar_lea.vmem [#allocation5], %s292
        // Predicated region
        $region41: #{tpu_custom_call.1} parent=35 // pred_check
          %p294 = pneg %p133
        $region42: #{tpu_custom_call.1} parent=35 // pred_check_branch
          %296 = sbr.rel (%p294) target = $region44
        $region43: #{tpu_custom_call.1} parent=35 // pred_region
          %s297 = smul.u32 4, %s21
          %s299 = ssub.s32 512, 512
          %300 = vsyncadd %s290, %s299
          %s301 = smul.addr %s297, 128
          %s302 = scalar_lea.hbm %s4, %s301
          %s304 = sshll.u32 %s293, 4
          %s305 = int_to_ptr.vmem [resolvable:$true] %s304
          %307 = dma.vmem_to_hbm [thread:$0]  %s305, 512, %s302, %s290
        $region44: #{tpu_custom_call.1} parent=35 // pred_fallthru
          _
      $region36: #{tpu_custom_call.1} parent=5 // pred_fallthru
        _
      %p308 = scmp.le.s32.totalorder 2, %s16
      // Predicated region
      $region45: #{tpu_custom_call.1} parent=5 // pred_check
        %p309 = pneg %p308
      $region46: #{tpu_custom_call.1} parent=5 // pred_check_branch
        %311 = sbr.rel (%p309) target = $region48
      $region47: #{tpu_custom_call.1} parent=5 // pred_region
        %s312 = ssub.s32 %s16, 2
        // Predicated region
        $region49: #{tpu_custom_call.1} parent=47 // pred_check
          %p313 = pneg %p139
        $region50: #{tpu_custom_call.1} parent=47 // pred_check_branch
          %315 = sbr.rel (%p313) target = $region52
        $region51: #{tpu_custom_call.1} parent=47 // pred_region
          %s316 = sand.u32 %s124, 1
          %s317 = scalar_lea.sflag [#allocation4], %s316
          %s318 = sand.u32 %s124, 1
          %s319 = smul.addr %s318, 32
          %s320 = scalar_lea.vmem [#allocation5], %s319
          %321 = dma.done %s317, 512
        $region52: #{tpu_custom_call.1} parent=47 // pred_fallthru
          _
      $region48: #{tpu_custom_call.1} parent=5 // pred_fallthru
        _
    $region6: #{tpu_custom_call.1} parent=1 // loop_footer
      %s20 = sadd.s32 1, %s16
    $region7: #{tpu_custom_call.1} parent=1 // loop_footer_branch
      %15 = sbr.rel target = $region3
    $region8: #{tpu_custom_call.1} parent=1 // loop_exit
      _
    %322 = vsyncpa [#allocation3], 1
    %s323 = scalar_lea.sflag [#allocation3], 1
    %324 = vsyncpa %s323, 1
    %325 = vsyncpa [#allocation4], 1
    %s326 = scalar_lea.sflag [#allocation4], 1
    %327 = vsyncpa %s326, 1

</llo_original>
